<compile_context>
chip_gen: v5e
topology: v5e:2x2
jax: 0.10.0
libtpu: 0.0.40
codegen_flags: <defaults>
</compile_context>

<pallas_src>
import jax
import jax.numpy as jnp
from jax import lax
from jax.experimental import pallas as pl
from jax.experimental.pallas import tpu as pltpu

# ----------------------------- model dims (small, TPU-friendly) -----------------------------
B = 2          # batch
T = 8          # sequence length
E = 32         # embedding dim
H = 32         # LSTM hidden dim  (4*H = 128 -> one full lane register for the gates)
V = 100        # vocab size
C = 16         # number of classes

BP = 8         # batch padded to the f32 sublane tile (8 rows)
VP = 128       # vocab rows padded to lane width (one-hot contraction dim)
CP = 128       # classes padded to lane width (lane-dense output store)
G4 = 4 * H     # gate width = 128


def lstm_classifier_kernel(tok_ref,     # (T*BP, 1) int32 time-major token ids (-1 = padded row)
                           emb_ref,     # (VP, E)   padded embedding table
                           wih_ref,     # (E, 4H)
                           whh_ref,     # (H, 4H)
                           b_ref,       # (1, 4H)   combined b_ih + b_hh
                           wout_ref,    # (H, CP)   classifier weight (class-padded)
                           bout_ref,    # (1, CP)   classifier bias (-1e30 on padded lanes)
                           out_ref,     # (BP, CP)  log-probabilities (padded batch/classes)
                           xproj_ref):  # scratch VMEM (T*BP, 4H) gathered per-(t,b) inputs
    # ---- hoisted input projection: one MXU pass over the whole padded table (bias folded in).
    eproj = (jnp.dot(emb_ref[...], wih_ref[...], preferred_element_type=jnp.float32)
             + b_ref[...])                                          # (VP, 4H)

    # ---- one-hot MXU gather: replaces 16 dynamic masked single-row copies with one matmul.
    #      token id -1 (padded batch rows) never matches the iota -> all-zero one-hot row.
    vocab_iota = lax.broadcasted_iota(jnp.int32, (T * BP, VP), 1)
    onehot = (vocab_iota == tok_ref[...]).astype(jnp.float32)       # (T*BP, VP)
    xproj_ref[...] = jnp.dot(onehot, eproj, preferred_element_type=jnp.float32)

    # ---- hoisted recurrence constants (PyTorch gate order i, f, g, o).
    lane = lax.broadcasted_iota(jnp.int32, (BP, G4), 1)
    g_mask = (lane >= 2 * H) & (lane < 3 * H)                       # g-gate lanes
    gate_scale = jnp.where(g_mask, 2.0, 1.0).astype(jnp.float32)    # tanh(x) = 2*sigmoid(2x)-1
    whh = whh_ref[...]                                              # stays in vregs across steps

    # ---- serial recurrence: only h @ W_hh + one sigmoid + one small tanh on the critical path.
    def step(t, carry):
        h, c = carry
        base = pl.multiple_of(t * BP, BP)
        x_t = xproj_ref[pl.ds(base, BP), :]                         # (BP, 4H), bias included
        gates = x_t + jnp.dot(h, whh, preferred_element_type=jnp.float32)
        y = jax.nn.sigmoid(gates * gate_scale)                      # single full-vreg EUP pass
        act = jnp.where(g_mask, 2.0 * y - 1.0, y)                   # i,f,o: sigmoid   g: tanh
        i_a = act[:, 0 * H:1 * H]
        f_a = act[:, 1 * H:2 * H]
        g_a = act[:, 2 * H:3 * H]
        o_a = act[:, 3 * H:4 * H]
        c_new = f_a * c + i_a * g_a
        h_new = o_a * jnp.tanh(c_new)
        return h_new, c_new

    h0 = jnp.zeros((BP, H), jnp.float32)
    c0 = jnp.zeros((BP, H), jnp.float32)
    h_T, _ = lax.fori_loop(0, T, step, (h0, c0), unroll=True)

    # ---- classifier + log_softmax on the last hidden state (lane-dense, unmasked store).
    #      padded class lanes carry a -1e30 bias -> exp underflows to 0 in the denominator.
    logits = (jnp.dot(h_T, wout_ref[...], preferred_element_type=jnp.float32)
              + bout_ref[...])                                      # (BP, CP)
    m = jnp.max(logits, axis=-1, keepdims=True)
    shifted = logits - m
    lse = jnp.log(jnp.sum(jnp.exp(shifted), axis=-1, keepdims=True))
    out_ref[...] = shifted - lse


def text_model_forward(x_tokens, params):
    """x_tokens: int32 [B, T] token ids.  Returns log-probabilities [B, C] (float32)."""
    emb, w_ih, w_hh, b, w_out, b_out = (params["emb"], params["w_ih"], params["w_hh"],
                                        params["b"], params["w_out"], params["b_out"])
    # pad vocab rows / class columns; padded class lanes get a huge negative bias
    emb_p = jnp.zeros((VP, E), jnp.float32).at[:V].set(emb)
    w_out_p = jnp.zeros((H, CP), jnp.float32).at[:, :C].set(w_out)
    b_out_p = jnp.full((1, CP), -1e30, jnp.float32).at[:, :C].set(b_out)
    # time-major token column; padded batch rows get id -1 (never gathered by the one-hot)
    tok_tm = jnp.full((T, BP), -1, jnp.int32).at[:, :B].set(x_tokens.T)
    tok_col = tok_tm.reshape(T * BP, 1)

    grid_spec = pltpu.PrefetchScalarGridSpec(
        num_scalar_prefetch=0,
        grid=(1,),                          # entire forward in one invocation
        in_specs=[
            pl.BlockSpec((T * BP, 1), lambda i: (0, 0)),            # token ids (VMEM column)
            pl.BlockSpec((VP, E), lambda i: (0, 0)),                # embedding table
            pl.BlockSpec((E, G4), lambda i: (0, 0)),                # W_ih
            pl.BlockSpec((H, G4), lambda i: (0, 0)),                # W_hh
            pl.BlockSpec((1, G4), lambda i: (0, 0)),                # bias (b_ih + b_hh)
            pl.BlockSpec((H, CP), lambda i: (0, 0)),                # classifier weight (padded)
            pl.BlockSpec((1, CP), lambda i: (0, 0)),                # classifier bias (padded)
        ],
        out_specs=pl.BlockSpec((BP, CP), lambda i: (0, 0)),
        scratch_shapes=[
            pltpu.VMEM((T * BP, G4), jnp.float32),                  # per-(t,b) input projections
        ],
    )

    out = pl.pallas_call(
        lstm_classifier_kernel,
        out_shape=jax.ShapeDtypeStruct((BP, CP), jnp.float32),
        grid_spec=grid_spec,
        compiler_params=pltpu.CompilerParams(
            dimension_semantics=("arbitrary",)),
    )(tok_col, emb_p, w_ih, w_hh, b, w_out_p, b_out_p)
    return out[:B, :C]                                              # drop padded batch/class lanes


def reference_forward(x_tokens, params):
    """Pure-JAX reference (same math, HIGHEST precision) for a numerical sanity check."""
    hp = jax.lax.Precision.HIGHEST
    x_emb = jnp.take(params["emb"], x_tokens, axis=0)               # (B, T, E)
    h = jnp.zeros((B, H), jnp.float32)
    c = jnp.zeros((B, H), jnp.float32)
    for t in range(T):
        gates = (jnp.dot(x_emb[:, t], params["w_ih"], precision=hp)
                 + jnp.dot(h, params["w_hh"], precision=hp) + params["b"])
        i_g = jax.nn.sigmoid(gates[:, 0 * H:1 * H])
        f_g = jax.nn.sigmoid(gates[:, 1 * H:2 * H])
        g_g = jnp.tanh(gates[:, 2 * H:3 * H])
        o_g = jax.nn.sigmoid(gates[:, 3 * H:4 * H])
        c = f_g * c + i_g * g_g
        h = o_g * jnp.tanh(c)
    logits = jnp.dot(h, params["w_out"], precision=hp) + params["b_out"]
    return jax.nn.log_softmax(logits, axis=-1)


def init_params(key):
    ks = jax.random.split(key, 6)
    scale = 0.1
    return {
        "emb":   scale * jax.random.normal(ks[0], (V, E), jnp.float32),
        "w_ih":  scale * jax.random.normal(ks[1], (E, G4), jnp.float32),
        "w_hh":  scale * jax.random.normal(ks[2], (H, G4), jnp.float32),
        # combined b_ih + b_hh (PyTorch has two bias vectors; their sum is equivalent)
        "b":     scale * jax.random.normal(ks[3], (1, G4), jnp.float32),
        "w_out": scale * jax.random.normal(ks[4], (H, C), jnp.float32),
        "b_out": scale * jax.random.normal(ks[5], (1, C), jnp.float32),
    }


if __name__ == "__main__":
    key = jax.random.PRNGKey(0)
    k_tok, k_par = jax.random.split(key)
    x_tokens = jax.random.randint(k_tok, (B, T), 0, V, dtype=jnp.int32)
    params = init_params(k_par)

    log_prob = text_model_forward(x_tokens, params)
    jax.block_until_ready(log_prob)

    assert log_prob.shape == (B, C)
    # rows of log_softmax must (approximately) sum to 1 in prob space
    assert bool(jnp.all(jnp.abs(jnp.sum(jnp.exp(log_prob), axis=-1) - 1.0) < 1e-4))
    # numerical agreement with the pure-JAX reference (MXU default precision vs HIGHEST)
    ref = reference_forward(x_tokens, params)
    assert bool(jnp.max(jnp.abs(log_prob - ref)) < 3e-3)
    print("KERNEL_OK")
</pallas_src>

<mosaic_0001>
module attributes {stable_mosaic.version = 11 : i64} {
  func.func @lstm_classifier_kernel(%arg0: i32, %arg1: memref<64x1xi32, #tpu.memory_space<vmem>>, %arg2: memref<128x32xf32, #tpu.memory_space<vmem>>, %arg3: memref<32x128xf32, #tpu.memory_space<vmem>>, %arg4: memref<32x128xf32, #tpu.memory_space<vmem>>, %arg5: memref<1x128xf32, #tpu.memory_space<vmem>>, %arg6: memref<32x128xf32, #tpu.memory_space<vmem>>, %arg7: memref<1x128xf32, #tpu.memory_space<vmem>>, %arg8: memref<8x128xf32, #tpu.memory_space<vmem>>, %arg9: memref<64x128xf32, #tpu.memory_space<vmem>>) attributes {dimension_semantics = [#tpu.dimension_semantics<arbitrary>], iteration_bounds = array<i64: 1>, scalar_prefetch = 0 : i64, scratch_operands = 1 : i64, tpu.core_type = #tpu.core_type<tc>, window_params = [{pipeline_mode = #tpu.pipeline_mode<synchronous>, transform_indices = @transform_0, window_bounds = array<i64: 64, 1>}, {pipeline_mode = #tpu.pipeline_mode<synchronous>, transform_indices = @transform_1, window_bounds = array<i64: 128, 32>}, {pipeline_mode = #tpu.pipeline_mode<synchronous>, transform_indices = @transform_2, window_bounds = array<i64: 32, 128>}, {pipeline_mode = #tpu.pipeline_mode<synchronous>, transform_indices = @transform_3, window_bounds = array<i64: 32, 128>}, {pipeline_mode = #tpu.pipeline_mode<synchronous>, transform_indices = @transform_4, window_bounds = array<i64: 1, 128>}, {pipeline_mode = #tpu.pipeline_mode<synchronous>, transform_indices = @transform_5, window_bounds = array<i64: 32, 128>}, {pipeline_mode = #tpu.pipeline_mode<synchronous>, transform_indices = @transform_6, window_bounds = array<i64: 1, 128>}, {pipeline_mode = #tpu.pipeline_mode<synchronous>, transform_indices = @transform_7, window_bounds = array<i64: 8, 128>}]} {
    %c0 = arith.constant 0 : index
    %c0_0 = arith.constant 0 : index
    %0 = vector.load %arg2[%c0, %c0_0] : memref<128x32xf32, #tpu.memory_space<vmem>>, vector<128x32xf32>
    %c0_1 = arith.constant 0 : index
    %c0_2 = arith.constant 0 : index
    %1 = vector.load %arg3[%c0_1, %c0_2] : memref<32x128xf32, #tpu.memory_space<vmem>>, vector<32x128xf32>
    %cst = arith.constant dense<0.000000e+00> : vector<128x128xf32>
    %2 = tpu.matmul %0, %1, %cst {dimension_numbers = #tpu.dot_dimension_numbers<[1], [0], [0], [1], [0, 0, 1, 1], [], []>} : vector<128x32xf32>, vector<32x128xf32>, vector<128x128xf32> -> vector<128x128xf32>
    %c0_3 = arith.constant 0 : index
    %c0_4 = arith.constant 0 : index
    %3 = vector.load %arg5[%c0_3, %c0_4] : memref<1x128xf32, #tpu.memory_space<vmem>>, vector<1x128xf32>
    %4 = vector.broadcast %3 : vector<1x128xf32> to vector<128x128xf32>
    %5 = arith.addf %2, %4 : vector<128x128xf32>
    %6 = tpu.iota {dimensions = array<i32: 1>} : vector<64x128xi32>
    %c0_5 = arith.constant 0 : index
    %c0_6 = arith.constant 0 : index
    %7 = vector.load %arg1[%c0_5, %c0_6] : memref<64x1xi32, #tpu.memory_space<vmem>>, vector<64x1xi32>
    %8 = vector.broadcast %7 : vector<64x1xi32> to vector<64x128xi32>
    %9 = arith.cmpi eq, %6, %8 : vector<64x128xi32>
    %10 = arith.extui %9 : vector<64x128xi1> to vector<64x128xi32>
    %11 = arith.sitofp %10 : vector<64x128xi32> to vector<64x128xf32>
    %cst_7 = arith.constant dense<0.000000e+00> : vector<64x128xf32>
    %12 = tpu.matmul %11, %5, %cst_7 {dimension_numbers = #tpu.dot_dimension_numbers<[1], [0], [0], [1], [0, 0, 1, 1], [], []>} : vector<64x128xf32>, vector<128x128xf32>, vector<64x128xf32> -> vector<64x128xf32>
    %c0_8 = arith.constant 0 : index
    %c0_9 = arith.constant 0 : index
    %13 = vector.load %arg9[%c0_8, %c0_9] : memref<64x128xf32, #tpu.memory_space<vmem>>, vector<64x128xf32>
    tpu.vector_store %arg9[%c0_8, %c0_9], %12 {strides = array<i32>} : memref<64x128xf32, #tpu.memory_space<vmem>>, vector<64x128xf32>,
    %14 = tpu.iota {dimensions = array<i32: 1>} : vector<8x128xi32>
    %c64_i32 = arith.constant 64 : i32
    %15 = vector.broadcast %c64_i32 : i32 to vector<8x128xi32>
    %16 = arith.cmpi sge, %14, %15 : vector<8x128xi32>
    %c96_i32 = arith.constant 96 : i32
    %17 = vector.broadcast %c96_i32 : i32 to vector<8x128xi32>
    %18 = arith.cmpi slt, %14, %17 : vector<8x128xi32>
    %19 = arith.andi %16, %18 : vector<8x128xi1>
    %cst_10 = arith.constant 2.000000e+00 : f32
    %cst_11 = arith.constant 1.000000e+00 : f32
    %20 = vector.broadcast %cst_10 : f32 to vector<8x128xf32>
    %21 = vector.broadcast %cst_11 : f32 to vector<8x128xf32>
    %22 = arith.select %19, %20, %21 : vector<8x128xi1>, vector<8x128xf32>
    %c0_12 = arith.constant 0 : index
    %c0_13 = arith.constant 0 : index
    %23 = vector.load %arg4[%c0_12, %c0_13] : memref<32x128xf32, #tpu.memory_space<vmem>>, vector<32x128xf32>
    %cst_14 = arith.constant 0.000000e+00 : f32
    %24 = vector.broadcast %cst_14 : f32 to vector<8x32xf32>
    %cst_15 = arith.constant 0.000000e+00 : f32
    %25 = vector.broadcast %cst_15 : f32 to vector<8x32xf32>
    %c0_i32 = arith.constant 0 : i32
    %c8_i32 = arith.constant 8 : i32
    %26 = arith.muli %c0_i32, %c8_i32 : i32
    %27 = tpu.assume_multiple %26, 8 : i32
    %28 = arith.index_cast %27 : i32 to index
    %c0_16 = arith.constant 0 : index
    %29 = vector.load %arg9[%28, %c0_16] : memref<64x128xf32, #tpu.memory_space<vmem>>, vector<8x128xf32>
    %cst_17 = arith.constant dense<0.000000e+00> : vector<8x128xf32>
    %30 = tpu.matmul %24, %23, %cst_17 {dimension_numbers = #tpu.dot_dimension_numbers<[1], [0], [0], [1], [0, 0, 1, 1], [], []>} : vector<8x32xf32>, vector<32x128xf32>, vector<8x128xf32> -> vector<8x128xf32>
    %31 = arith.addf %29, %30 : vector<8x128xf32>
    %32 = arith.mulf %31, %22 : vector<8x128xf32>
    %33 = arith.negf %32 : vector<8x128xf32>
    %34 = math.exp %33 : vector<8x128xf32>
    %cst_18 = arith.constant 1.000000e+00 : f32
    %35 = vector.broadcast %cst_18 : f32 to vector<8x128xf32>
    %36 = arith.addf %35, %34 : vector<8x128xf32>
    %37 = arith.divf %35, %36 : vector<8x128xf32>
    %cst_19 = arith.constant 2.000000e+00 : f32
    %38 = vector.broadcast %cst_19 : f32 to vector<8x128xf32>
    %39 = arith.mulf %38, %37 : vector<8x128xf32>
    %cst_20 = arith.constant 1.000000e+00 : f32
    %40 = vector.broadcast %cst_20 : f32 to vector<8x128xf32>
    %41 = arith.subf %39, %40 : vector<8x128xf32>
    %42 = arith.select %19, %41, %37 : vector<8x128xi1>, vector<8x128xf32>
    %43 = vector.extract_strided_slice %42 {offsets = [0, 0], sizes = [8, 32], strides = [1, 1]} : vector<8x128xf32> to vector<8x32xf32>
    %44 = vector.extract_strided_slice %42 {offsets = [0, 32], sizes = [8, 32], strides = [1, 1]} : vector<8x128xf32> to vector<8x32xf32>
    %45 = vector.extract_strided_slice %42 {offsets = [0, 64], sizes = [8, 32], strides = [1, 1]} : vector<8x128xf32> to vector<8x32xf32>
    %46 = vector.extract_strided_slice %42 {offsets = [0, 96], sizes = [8, 32], strides = [1, 1]} : vector<8x128xf32> to vector<8x32xf32>
    %47 = arith.mulf %44, %25 : vector<8x32xf32>
    %48 = arith.mulf %43, %45 : vector<8x32xf32>
    %49 = arith.addf %47, %48 : vector<8x32xf32>
    %50 = math.tanh %49 : vector<8x32xf32>
    %51 = arith.mulf %46, %50 : vector<8x32xf32>
    %c1_i32 = arith.constant 1 : i32
    %c8_i32_21 = arith.constant 8 : i32
    %52 = arith.muli %c1_i32, %c8_i32_21 : i32
    %53 = tpu.assume_multiple %52, 8 : i32
    %54 = arith.index_cast %53 : i32 to index
    %c0_22 = arith.constant 0 : index
    %55 = vector.load %arg9[%54, %c0_22] : memref<64x128xf32, #tpu.memory_space<vmem>>, vector<8x128xf32>
    %cst_23 = arith.constant dense<0.000000e+00> : vector<8x128xf32>
    %56 = tpu.matmul %51, %23, %cst_23 {dimension_numbers = #tpu.dot_dimension_numbers<[1], [0], [0], [1], [0, 0, 1, 1], [], []>} : vector<8x32xf32>, vector<32x128xf32>, vector<8x128xf32> -> vector<8x128xf32>
    %57 = arith.addf %55, %56 : vector<8x128xf32>
    %58 = arith.mulf %57, %22 : vector<8x128xf32>
    %59 = arith.negf %58 : vector<8x128xf32>
    %60 = math.exp %59 : vector<8x128xf32>
    %cst_24 = arith.constant 1.000000e+00 : f32
    %61 = vector.broadcast %cst_24 : f32 to vector<8x128xf32>
    %62 = arith.addf %61, %60 : vector<8x128xf32>
    %63 = arith.divf %61, %62 : vector<8x128xf32>
    %cst_25 = arith.constant 2.000000e+00 : f32
    %64 = vector.broadcast %cst_25 : f32 to vector<8x128xf32>
    %65 = arith.mulf %64, %63 : vector<8x128xf32>
    %cst_26 = arith.constant 1.000000e+00 : f32
    %66 = vector.broadcast %cst_26 : f32 to vector<8x128xf32>
    %67 = arith.subf %65, %66 : vector<8x128xf32>
    %68 = arith.select %19, %67, %63 : vector<8x128xi1>, vector<8x128xf32>
    %69 = vector.extract_strided_slice %68 {offsets = [0, 0], sizes = [8, 32], strides = [1, 1]} : vector<8x128xf32> to vector<8x32xf32>
    %70 = vector.extract_strided_slice %68 {offsets = [0, 32], sizes = [8, 32], strides = [1, 1]} : vector<8x128xf32> to vector<8x32xf32>
    %71 = vector.extract_strided_slice %68 {offsets = [0, 64], sizes = [8, 32], strides = [1, 1]} : vector<8x128xf32> to vector<8x32xf32>
    %72 = vector.extract_strided_slice %68 {offsets = [0, 96], sizes = [8, 32], strides = [1, 1]} : vector<8x128xf32> to vector<8x32xf32>
    %73 = arith.mulf %70, %49 : vector<8x32xf32>
    %74 = arith.mulf %69, %71 : vector<8x32xf32>
    %75 = arith.addf %73, %74 : vector<8x32xf32>
    %76 = math.tanh %75 : vector<8x32xf32>
    %77 = arith.mulf %72, %76 : vector<8x32xf32>
    %c2_i32 = arith.constant 2 : i32
    %c8_i32_27 = arith.constant 8 : i32
    %78 = arith.muli %c2_i32, %c8_i32_27 : i32
    %79 = tpu.assume_multiple %78, 8 : i32
    %80 = arith.index_cast %79 : i32 to index
    %c0_28 = arith.constant 0 : index
    %81 = vector.load %arg9[%80, %c0_28] : memref<64x128xf32, #tpu.memory_space<vmem>>, vector<8x128xf32>
    %cst_29 = arith.constant dense<0.000000e+00> : vector<8x128xf32>
    %82 = tpu.matmul %77, %23, %cst_29 {dimension_numbers = #tpu.dot_dimension_numbers<[1], [0], [0], [1], [0, 0, 1, 1], [], []>} : vector<8x32xf32>, vector<32x128xf32>, vector<8x128xf32> -> vector<8x128xf32>
    %83 = arith.addf %81, %82 : vector<8x128xf32>
    %84 = arith.mulf %83, %22 : vector<8x128xf32>
    %85 = arith.negf %84 : vector<8x128xf32>
    %86 = math.exp %85 : vector<8x128xf32>
    %cst_30 = arith.constant 1.000000e+00 : f32
    %87 = vector.broadcast %cst_30 : f32 to vector<8x128xf32>
    %88 = arith.addf %87, %86 : vector<8x128xf32>
    %89 = arith.divf %87, %88 : vector<8x128xf32>
    %cst_31 = arith.constant 2.000000e+00 : f32
    %90 = vector.broadcast %cst_31 : f32 to vector<8x128xf32>
    %91 = arith.mulf %90, %89 : vector<8x128xf32>
    %cst_32 = arith.constant 1.000000e+00 : f32
    %92 = vector.broadcast %cst_32 : f32 to vector<8x128xf32>
    %93 = arith.subf %91, %92 : vector<8x128xf32>
    %94 = arith.select %19, %93, %89 : vector<8x128xi1>, vector<8x128xf32>
    %95 = vector.extract_strided_slice %94 {offsets = [0, 0], sizes = [8, 32], strides = [1, 1]} : vector<8x128xf32> to vector<8x32xf32>
    %96 = vector.extract_strided_slice %94 {offsets = [0, 32], sizes = [8, 32], strides = [1, 1]} : vector<8x128xf32> to vector<8x32xf32>
    %97 = vector.extract_strided_slice %94 {offsets = [0, 64], sizes = [8, 32], strides = [1, 1]} : vector<8x128xf32> to vector<8x32xf32>
    %98 = vector.extract_strided_slice %94 {offsets = [0, 96], sizes = [8, 32], strides = [1, 1]} : vector<8x128xf32> to vector<8x32xf32>
    %99 = arith.mulf %96, %75 : vector<8x32xf32>
    %100 = arith.mulf %95, %97 : vector<8x32xf32>
    %101 = arith.addf %99, %100 : vector<8x32xf32>
    %102 = math.tanh %101 : vector<8x32xf32>
    %103 = arith.mulf %98, %102 : vector<8x32xf32>
    %c3_i32 = arith.constant 3 : i32
    %c8_i32_33 = arith.constant 8 : i32
    %104 = arith.muli %c3_i32, %c8_i32_33 : i32
    %105 = tpu.assume_multiple %104, 8 : i32
    %106 = arith.index_cast %105 : i32 to index
    %c0_34 = arith.constant 0 : index
    %107 = vector.load %arg9[%106, %c0_34] : memref<64x128xf32, #tpu.memory_space<vmem>>, vector<8x128xf32>
    %cst_35 = arith.constant dense<0.000000e+00> : vector<8x128xf32>
    %108 = tpu.matmul %103, %23, %cst_35 {dimension_numbers = #tpu.dot_dimension_numbers<[1], [0], [0], [1], [0, 0, 1, 1], [], []>} : vector<8x32xf32>, vector<32x128xf32>, vector<8x128xf32> -> vector<8x128xf32>
    %109 = arith.addf %107, %108 : vector<8x128xf32>
    %110 = arith.mulf %109, %22 : vector<8x128xf32>
    %111 = arith.negf %110 : vector<8x128xf32>
    %112 = math.exp %111 : vector<8x128xf32>
    %cst_36 = arith.constant 1.000000e+00 : f32
    %113 = vector.broadcast %cst_36 : f32 to vector<8x128xf32>
    %114 = arith.addf %113, %112 : vector<8x128xf32>
    %115 = arith.divf %113, %114 : vector<8x128xf32>
    %cst_37 = arith.constant 2.000000e+00 : f32
    %116 = vector.broadcast %cst_37 : f32 to vector<8x128xf32>
    %117 = arith.mulf %116, %115 : vector<8x128xf32>
    %cst_38 = arith.constant 1.000000e+00 : f32
    %118 = vector.broadcast %cst_38 : f32 to vector<8x128xf32>
    %119 = arith.subf %117, %118 : vector<8x128xf32>
    %120 = arith.select %19, %119, %115 : vector<8x128xi1>, vector<8x128xf32>
    %121 = vector.extract_strided_slice %120 {offsets = [0, 0], sizes = [8, 32], strides = [1, 1]} : vector<8x128xf32> to vector<8x32xf32>
    %122 = vector.extract_strided_slice %120 {offsets = [0, 32], sizes = [8, 32], strides = [1, 1]} : vector<8x128xf32> to vector<8x32xf32>
    %123 = vector.extract_strided_slice %120 {offsets = [0, 64], sizes = [8, 32], strides = [1, 1]} : vector<8x128xf32> to vector<8x32xf32>
    %124 = vector.extract_strided_slice %120 {offsets = [0, 96], sizes = [8, 32], strides = [1, 1]} : vector<8x128xf32> to vector<8x32xf32>
    %125 = arith.mulf %122, %101 : vector<8x32xf32>
    %126 = arith.mulf %121, %123 : vector<8x32xf32>
    %127 = arith.addf %125, %126 : vector<8x32xf32>
    %128 = math.tanh %127 : vector<8x32xf32>
    %129 = arith.mulf %124, %128 : vector<8x32xf32>
    %c4_i32 = arith.constant 4 : i32
    %c8_i32_39 = arith.constant 8 : i32
    %130 = arith.muli %c4_i32, %c8_i32_39 : i32
    %131 = tpu.assume_multiple %130, 8 : i32
    %132 = arith.index_cast %131 : i32 to index
    %c0_40 = arith.constant 0 : index
    %133 = vector.load %arg9[%132, %c0_40] : memref<64x128xf32, #tpu.memory_space<vmem>>, vector<8x128xf32>
    %cst_41 = arith.constant dense<0.000000e+00> : vector<8x128xf32>
    %134 = tpu.matmul %129, %23, %cst_41 {dimension_numbers = #tpu.dot_dimension_numbers<[1], [0], [0], [1], [0, 0, 1, 1], [], []>} : vector<8x32xf32>, vector<32x128xf32>, vector<8x128xf32> -> vector<8x128xf32>
    %135 = arith.addf %133, %134 : vector<8x128xf32>
    %136 = arith.mulf %135, %22 : vector<8x128xf32>
    %137 = arith.negf %136 : vector<8x128xf32>
    %138 = math.exp %137 : vector<8x128xf32>
    %cst_42 = arith.constant 1.000000e+00 : f32
    %139 = vector.broadcast %cst_42 : f32 to vector<8x128xf32>
    %140 = arith.addf %139, %138 : vector<8x128xf32>
    %141 = arith.divf %139, %140 : vector<8x128xf32>
    %cst_43 = arith.constant 2.000000e+00 : f32
    %142 = vector.broadcast %cst_43 : f32 to vector<8x128xf32>
    %143 = arith.mulf %142, %141 : vector<8x128xf32>
    %cst_44 = arith.constant 1.000000e+00 : f32
    %144 = vector.broadcast %cst_44 : f32 to vector<8x128xf32>
    %145 = arith.subf %143, %144 : vector<8x128xf32>
    %146 = arith.select %19, %145, %141 : vector<8x128xi1>, vector<8x128xf32>
    %147 = vector.extract_strided_slice %146 {offsets = [0, 0], sizes = [8, 32], strides = [1, 1]} : vector<8x128xf32> to vector<8x32xf32>
    %148 = vector.extract_strided_slice %146 {offsets = [0, 32], sizes = [8, 32], strides = [1, 1]} : vector<8x128xf32> to vector<8x32xf32>
    %149 = vector.extract_strided_slice %146 {offsets = [0, 64], sizes = [8, 32], strides = [1, 1]} : vector<8x128xf32> to vector<8x32xf32>
    %150 = vector.extract_strided_slice %146 {offsets = [0, 96], sizes = [8, 32], strides = [1, 1]} : vector<8x128xf32> to vector<8x32xf32>
    %151 = arith.mulf %148, %127 : vector<8x32xf32>
    %152 = arith.mulf %147, %149 : vector<8x32xf32>
    %153 = arith.addf %151, %152 : vector<8x32xf32>
    %154 = math.tanh %153 : vector<8x32xf32>
    %155 = arith.mulf %150, %154 : vector<8x32xf32>
    %c5_i32 = arith.constant 5 : i32
    %c8_i32_45 = arith.constant 8 : i32
    %156 = arith.muli %c5_i32, %c8_i32_45 : i32
    %157 = tpu.assume_multiple %156, 8 : i32
    %158 = arith.index_cast %157 : i32 to index
    %c0_46 = arith.constant 0 : index
    %159 = vector.load %arg9[%158, %c0_46] : memref<64x128xf32, #tpu.memory_space<vmem>>, vector<8x128xf32>
    %cst_47 = arith.constant dense<0.000000e+00> : vector<8x128xf32>
    %160 = tpu.matmul %155, %23, %cst_47 {dimension_numbers = #tpu.dot_dimension_numbers<[1], [0], [0], [1], [0, 0, 1, 1], [], []>} : vector<8x32xf32>, vector<32x128xf32>, vector<8x128xf32> -> vector<8x128xf32>
    %161 = arith.addf %159, %160 : vector<8x128xf32>
    %162 = arith.mulf %161, %22 : vector<8x128xf32>
    %163 = arith.negf %162 : vector<8x128xf32>
    %164 = math.exp %163 : vector<8x128xf32>
    %cst_48 = arith.constant 1.000000e+00 : f32
    %165 = vector.broadcast %cst_48 : f32 to vector<8x128xf32>
    %166 = arith.addf %165, %164 : vector<8x128xf32>
    %167 = arith.divf %165, %166 : vector<8x128xf32>
    %cst_49 = arith.constant 2.000000e+00 : f32
    %168 = vector.broadcast %cst_49 : f32 to vector<8x128xf32>
    %169 = arith.mulf %168, %167 : vector<8x128xf32>
    %cst_50 = arith.constant 1.000000e+00 : f32
    %170 = vector.broadcast %cst_50 : f32 to vector<8x128xf32>
    %171 = arith.subf %169, %170 : vector<8x128xf32>
    %172 = arith.select %19, %171, %167 : vector<8x128xi1>, vector<8x128xf32>
    %173 = vector.extract_strided_slice %172 {offsets = [0, 0], sizes = [8, 32], strides = [1, 1]} : vector<8x128xf32> to vector<8x32xf32>
    %174 = vector.extract_strided_slice %172 {offsets = [0, 32], sizes = [8, 32], strides = [1, 1]} : vector<8x128xf32> to vector<8x32xf32>
    %175 = vector.extract_strided_slice %172 {offsets = [0, 64], sizes = [8, 32], strides = [1, 1]} : vector<8x128xf32> to vector<8x32xf32>
    %176 = vector.extract_strided_slice %172 {offsets = [0, 96], sizes = [8, 32], strides = [1, 1]} : vector<8x128xf32> to vector<8x32xf32>
    %177 = arith.mulf %174, %153 : vector<8x32xf32>
    %178 = arith.mulf %173, %175 : vector<8x32xf32>
    %179 = arith.addf %177, %178 : vector<8x32xf32>
    %180 = math.tanh %179 : vector<8x32xf32>
    %181 = arith.mulf %176, %180 : vector<8x32xf32>
    %c6_i32 = arith.constant 6 : i32
    %c8_i32_51 = arith.constant 8 : i32
    %182 = arith.muli %c6_i32, %c8_i32_51 : i32
    %183 = tpu.assume_multiple %182, 8 : i32
    %184 = arith.index_cast %183 : i32 to index
    %c0_52 = arith.constant 0 : index
    %185 = vector.load %arg9[%184, %c0_52] : memref<64x128xf32, #tpu.memory_space<vmem>>, vector<8x128xf32>
    %cst_53 = arith.constant dense<0.000000e+00> : vector<8x128xf32>
    %186 = tpu.matmul %181, %23, %cst_53 {dimension_numbers = #tpu.dot_dimension_numbers<[1], [0], [0], [1], [0, 0, 1, 1], [], []>} : vector<8x32xf32>, vector<32x128xf32>, vector<8x128xf32> -> vector<8x128xf32>
    %187 = arith.addf %185, %186 : vector<8x128xf32>
    %188 = arith.mulf %187, %22 : vector<8x128xf32>
    %189 = arith.negf %188 : vector<8x128xf32>
    %190 = math.exp %189 : vector<8x128xf32>
    %cst_54 = arith.constant 1.000000e+00 : f32
    %191 = vector.broadcast %cst_54 : f32 to vector<8x128xf32>
    %192 = arith.addf %191, %190 : vector<8x128xf32>
    %193 = arith.divf %191, %192 : vector<8x128xf32>
    %cst_55 = arith.constant 2.000000e+00 : f32
    %194 = vector.broadcast %cst_55 : f32 to vector<8x128xf32>
    %195 = arith.mulf %194, %193 : vector<8x128xf32>
    %cst_56 = arith.constant 1.000000e+00 : f32
    %196 = vector.broadcast %cst_56 : f32 to vector<8x128xf32>
    %197 = arith.subf %195, %196 : vector<8x128xf32>
    %198 = arith.select %19, %197, %193 : vector<8x128xi1>, vector<8x128xf32>
    %199 = vector.extract_strided_slice %198 {offsets = [0, 0], sizes = [8, 32], strides = [1, 1]} : vector<8x128xf32> to vector<8x32xf32>
    %200 = vector.extract_strided_slice %198 {offsets = [0, 32], sizes = [8, 32], strides = [1, 1]} : vector<8x128xf32> to vector<8x32xf32>
    %201 = vector.extract_strided_slice %198 {offsets = [0, 64], sizes = [8, 32], strides = [1, 1]} : vector<8x128xf32> to vector<8x32xf32>
    %202 = vector.extract_strided_slice %198 {offsets = [0, 96], sizes = [8, 32], strides = [1, 1]} : vector<8x128xf32> to vector<8x32xf32>
    %203 = arith.mulf %200, %179 : vector<8x32xf32>
    %204 = arith.mulf %199, %201 : vector<8x32xf32>
    %205 = arith.addf %203, %204 : vector<8x32xf32>
    %206 = math.tanh %205 : vector<8x32xf32>
    %207 = arith.mulf %202, %206 : vector<8x32xf32>
    %c7_i32 = arith.constant 7 : i32
    %c8_i32_57 = arith.constant 8 : i32
    %208 = arith.muli %c7_i32, %c8_i32_57 : i32
    %209 = tpu.assume_multiple %208, 8 : i32
    %210 = arith.index_cast %209 : i32 to index
    %c0_58 = arith.constant 0 : index
    %211 = vector.load %arg9[%210, %c0_58] : memref<64x128xf32, #tpu.memory_space<vmem>>, vector<8x128xf32>
    %cst_59 = arith.constant dense<0.000000e+00> : vector<8x128xf32>
    %212 = tpu.matmul %207, %23, %cst_59 {dimension_numbers = #tpu.dot_dimension_numbers<[1], [0], [0], [1], [0, 0, 1, 1], [], []>} : vector<8x32xf32>, vector<32x128xf32>, vector<8x128xf32> -> vector<8x128xf32>
    %213 = arith.addf %211, %212 : vector<8x128xf32>
    %214 = arith.mulf %213, %22 : vector<8x128xf32>
    %215 = arith.negf %214 : vector<8x128xf32>
    %216 = math.exp %215 : vector<8x128xf32>
    %cst_60 = arith.constant 1.000000e+00 : f32
    %217 = vector.broadcast %cst_60 : f32 to vector<8x128xf32>
    %218 = arith.addf %217, %216 : vector<8x128xf32>
    %219 = arith.divf %217, %218 : vector<8x128xf32>
    %cst_61 = arith.constant 2.000000e+00 : f32
    %220 = vector.broadcast %cst_61 : f32 to vector<8x128xf32>
    %221 = arith.mulf %220, %219 : vector<8x128xf32>
    %cst_62 = arith.constant 1.000000e+00 : f32
    %222 = vector.broadcast %cst_62 : f32 to vector<8x128xf32>
    %223 = arith.subf %221, %222 : vector<8x128xf32>
    %224 = arith.select %19, %223, %219 : vector<8x128xi1>, vector<8x128xf32>
    %225 = vector.extract_strided_slice %224 {offsets = [0, 0], sizes = [8, 32], strides = [1, 1]} : vector<8x128xf32> to vector<8x32xf32>
    %226 = vector.extract_strided_slice %224 {offsets = [0, 32], sizes = [8, 32], strides = [1, 1]} : vector<8x128xf32> to vector<8x32xf32>
    %227 = vector.extract_strided_slice %224 {offsets = [0, 64], sizes = [8, 32], strides = [1, 1]} : vector<8x128xf32> to vector<8x32xf32>
    %228 = vector.extract_strided_slice %224 {offsets = [0, 96], sizes = [8, 32], strides = [1, 1]} : vector<8x128xf32> to vector<8x32xf32>
    %229 = arith.mulf %226, %205 : vector<8x32xf32>
    %230 = arith.mulf %225, %227 : vector<8x32xf32>
    %231 = arith.addf %229, %230 : vector<8x32xf32>
    %232 = math.tanh %231 : vector<8x32xf32>
    %233 = arith.mulf %228, %232 : vector<8x32xf32>
    %c8_i32_63 = arith.constant 8 : i32
    %c0_64 = arith.constant 0 : index
    %c0_65 = arith.constant 0 : index
    %234 = vector.load %arg6[%c0_64, %c0_65] : memref<32x128xf32, #tpu.memory_space<vmem>>, vector<32x128xf32>
    %cst_66 = arith.constant dense<0.000000e+00> : vector<8x128xf32>
    %235 = tpu.matmul %233, %234, %cst_66 {dimension_numbers = #tpu.dot_dimension_numbers<[1], [0], [0], [1], [0, 0, 1, 1], [], []>} : vector<8x32xf32>, vector<32x128xf32>, vector<8x128xf32> -> vector<8x128xf32>
    %c0_67 = arith.constant 0 : index
    %c0_68 = arith.constant 0 : index
    %236 = vector.load %arg7[%c0_67, %c0_68] : memref<1x128xf32, #tpu.memory_space<vmem>>, vector<1x128xf32>
    %237 = vector.broadcast %236 : vector<1x128xf32> to vector<8x128xf32>
    %238 = arith.addf %235, %237 : vector<8x128xf32>
    %cst_69 = arith.constant dense<0xFF800000> : vector<8xf32>
    %239 = vector.multi_reduction <maximumf>, %238, %cst_69 [1] : vector<8x128xf32> to vector<8xf32>
    %240 = vector.shape_cast %239 : vector<8xf32> to vector<8x1xf32>
    %241 = vector.broadcast %240 : vector<8x1xf32> to vector<8x128xf32>
    %242 = arith.subf %238, %241 : vector<8x128xf32>
    %243 = math.exp %242 : vector<8x128xf32>
    %cst_70 = arith.constant dense<0.000000e+00> : vector<8xf32>
    %244 = vector.multi_reduction <add>, %243, %cst_70 [1] : vector<8x128xf32> to vector<8xf32>
    %245 = vector.shape_cast %244 : vector<8xf32> to vector<8x1xf32>
    %246 = math.log %245 : vector<8x1xf32>
    %247 = vector.broadcast %246 : vector<8x1xf32> to vector<8x128xf32>
    %248 = arith.subf %242, %247 : vector<8x128xf32>
    %c0_71 = arith.constant 0 : index
    %c0_72 = arith.constant 0 : index
    %249 = vector.load %arg8[%c0_71, %c0_72] : memref<8x128xf32, #tpu.memory_space<vmem>>, vector<8x128xf32>
    tpu.vector_store %arg8[%c0_71, %c0_72], %248 {strides = array<i32>} : memref<8x128xf32, #tpu.memory_space<vmem>>, vector<8x128xf32>,
    return
  }
  func.func @transform_0(%arg0: i32) -> (i32, i32) {
    %c0_i32 = arith.constant 0 : i32
    %c0_i32_0 = arith.constant 0 : i32
    %c0_i32_1 = arith.constant 0 : i32
    return %c0_i32, %c0_i32_0 : i32, i32
  }
  func.func @transform_1(%arg0: i32) -> (i32, i32) {
    %c0_i32 = arith.constant 0 : i32
    %c0_i32_0 = arith.constant 0 : i32
    %c0_i32_1 = arith.constant 0 : i32
    return %c0_i32, %c0_i32_0 : i32, i32
  }
  func.func @transform_2(%arg0: i32) -> (i32, i32) {
    %c0_i32 = arith.constant 0 : i32
    %c0_i32_0 = arith.constant 0 : i32
    %c0_i32_1 = arith.constant 0 : i32
    return %c0_i32, %c0_i32_0 : i32, i32
  }
  func.func @transform_3(%arg0: i32) -> (i32, i32) {
    %c0_i32 = arith.constant 0 : i32
    %c0_i32_0 = arith.constant 0 : i32
    %c0_i32_1 = arith.constant 0 : i32
    return %c0_i32, %c0_i32_0 : i32, i32
  }
  func.func @transform_4(%arg0: i32) -> (i32, i32) {
    %c0_i32 = arith.constant 0 : i32
    %c0_i32_0 = arith.constant 0 : i32
    %c0_i32_1 = arith.constant 0 : i32
    return %c0_i32, %c0_i32_0 : i32, i32
  }
  func.func @transform_5(%arg0: i32) -> (i32, i32) {
    %c0_i32 = arith.constant 0 : i32
    %c0_i32_0 = arith.constant 0 : i32
    %c0_i32_1 = arith.constant 0 : i32
    return %c0_i32, %c0_i32_0 : i32, i32
  }
  func.func @transform_6(%arg0: i32) -> (i32, i32) {
    %c0_i32 = arith.constant 0 : i32
    %c0_i32_0 = arith.constant 0 : i32
    %c0_i32_1 = arith.constant 0 : i32
    return %c0_i32, %c0_i32_0 : i32, i32
  }
  func.func @transform_7(%arg0: i32) -> (i32, i32) {
    %c0_i32 = arith.constant 0 : i32
    %c0_i32_0 = arith.constant 0 : i32
    %c0_i32_1 = arith.constant 0 : i32
    return %c0_i32, %c0_i32_0 : i32, i32
  }
}

</mosaic_0001>

<llo_original>
// kernel: tpu_custom_call.1
$region0: #{tpu_custom_call.1}
  #allocation0 [shape = 'u32[]', space=smem, size = 0x4, offset = 0x4, fixed_abs, tag = 'smem constant byte address 0x4 - core index']
  #allocation1 [shape = 'u32[72,128]{1,0:T(1,128)}', space=vmem, size = 0x9000, scoped, tag = 'internal scratch']
  #allocation2 [shape = 'f32[64,128]{1,0:T(8,128)}', space=vmem, size = 0x8000, scoped, tag = 'scratch operand']
  %s0 = inlined_call_operand.vmem [shape: s32[64,1], index: 0, kind: input, shape index: {}]
  %s1 = inlined_call_operand.vmem [shape: f32[128,32], index: 1, kind: input, shape index: {}]
  %s2 = inlined_call_operand.vmem [shape: f32[32,128], index: 2, kind: input, shape index: {}]
  %s3 = inlined_call_operand.vmem [shape: f32[32,128], index: 3, kind: input, shape index: {}]
  %s4 = inlined_call_operand.vmem [shape: f32[1,128], index: 4, kind: input, shape index: {}]
  %s5 = inlined_call_operand.vmem [shape: f32[32,128], index: 5, kind: input, shape index: {}]
  %s6 = inlined_call_operand.vmem [shape: f32[1,128], index: 6, kind: input, shape index: {}]
  %s7 = inlined_call_operand.hbm [shape: f32[8,128], index: 7, kind: output, shape index: {}]
  %s8 = sld [smem:[#allocation0]]
  $region38: #{tpu_custom_call.1} parent=0
    _
  %s10 = ssub.s32 1, %s8
  %s11 = scalar_select 0, %s10, %s8
  $region1: #{tpu_custom_call.1} parent=0
    #allocation3 [shape = 'u8[4096]{0}', space=vmem, size = 0x1000, scoped, tag = 'output window, operand 0, single buffered']
    #allocation4 [shape = 's32[1]{0}', space=sflag, size = 0x4, scoped, tag = 'scoped memory for tpu_custom_call.1']
    %12 = vsyncpa [#allocation4], 0
    // Predicated region
    $region2: #{tpu_custom_call.1} parent=1 // pred_check
      _
    $region3: #{tpu_custom_call.1} parent=1 // pred_check_branch
      %14 = sbr.rel (0) target = $region5
    $region4: #{tpu_custom_call.1} parent=1 // pred_region
      _
    $region5: #{tpu_custom_call.1} parent=1 // pred_fallthru
      _
    // Predicated region
    $region6: #{tpu_custom_call.1} parent=1 // pred_check
      _
    $region7: #{tpu_custom_call.1} parent=1 // pred_check_branch
      %16 = sbr.rel (0) target = $region9
    $region8: #{tpu_custom_call.1} parent=1 // pred_region
      _
    $region9: #{tpu_custom_call.1} parent=1 // pred_fallthru
      _
    // Predicated region
    $region10: #{tpu_custom_call.1} parent=1 // pred_check
      _
    $region11: #{tpu_custom_call.1} parent=1 // pred_check_branch
      %18 = sbr.rel (0) target = $region13
    $region12: #{tpu_custom_call.1} parent=1 // pred_region
      _
    $region13: #{tpu_custom_call.1} parent=1 // pred_fallthru
      _
    // Predicated region
    $region14: #{tpu_custom_call.1} parent=1 // pred_check
      _
    $region15: #{tpu_custom_call.1} parent=1 // pred_check_branch
      %20 = sbr.rel (0) target = $region17
    $region16: #{tpu_custom_call.1} parent=1 // pred_region
      _
    $region17: #{tpu_custom_call.1} parent=1 // pred_fallthru
      _
    // Predicated region
    $region18: #{tpu_custom_call.1} parent=1 // pred_check
      _
    $region19: #{tpu_custom_call.1} parent=1 // pred_check_branch
      %22 = sbr.rel (0) target = $region21
    $region20: #{tpu_custom_call.1} parent=1 // pred_region
      _
    $region21: #{tpu_custom_call.1} parent=1 // pred_fallthru
      _
    // Predicated region
    $region22: #{tpu_custom_call.1} parent=1 // pred_check
      _
    $region23: #{tpu_custom_call.1} parent=1 // pred_check_branch
      %24 = sbr.rel (0) target = $region25
    $region24: #{tpu_custom_call.1} parent=1 // pred_region
      _
    $region25: #{tpu_custom_call.1} parent=1 // pred_fallthru
      _
    // Predicated region
    $region26: #{tpu_custom_call.1} parent=1 // pred_check
      _
    $region27: #{tpu_custom_call.1} parent=1 // pred_check_branch
      %26 = sbr.rel (0) target = $region29
    $region28: #{tpu_custom_call.1} parent=1 // pred_region
      _
    $region29: #{tpu_custom_call.1} parent=1 // pred_fallthru
      _
    %v27 = vld [vmem:[%s1] sm:$0xff]
    %v28 = vld [vmem:[%s1 + $0x8] sm:$0xff]
    %v29 = vld [vmem:[%s1 + $0x10] sm:$0xff]
    %v30 = vld [vmem:[%s1 + $0x18] sm:$0xff]
    %v31 = vld [vmem:[%s1 + $0x20] sm:$0xff]
    %v32 = vld [vmem:[%s1 + $0x28] sm:$0xff]
    %v33 = vld [vmem:[%s1 + $0x30] sm:$0xff]
    %v34 = vld [vmem:[%s1 + $0x38] sm:$0xff]
    %v35 = vld [vmem:[%s1 + $0x40] sm:$0xff]
    %v36 = vld [vmem:[%s1 + $0x48] sm:$0xff]
    %v37 = vld [vmem:[%s1 + $0x50] sm:$0xff]
    %v38 = vld [vmem:[%s1 + $0x58] sm:$0xff]
    %v39 = vld [vmem:[%s1 + $0x60] sm:$0xff]
    %v40 = vld [vmem:[%s1 + $0x68] sm:$0xff]
    %v41 = vld [vmem:[%s1 + $0x70] sm:$0xff]
    %v42 = vld [vmem:[%s1 + $0x78] sm:$0xff]
    %v43 = vld [vmem:[%s2] sm:$0xff]
    %v44 = vld [vmem:[%s2 + $0x8] sm:$0xff]
    %v45 = vld [vmem:[%s2 + $0x10] sm:$0xff]
    %v46 = vld [vmem:[%s2 + $0x18] sm:$0xff]
    %v47 = vld [vmem:[%s4] sm:$0x1]
    %v49 = vperm.slane %v47, 0
    %vm51 = vcmask 261120
    %v53 = vsel %vm51, %v27, 0
    %v56 = vsel %vm51, %v28, 0
    %v59 = vsel %vm51, %v29, 0
    %v62 = vsel %vm51, %v30, 0
    %v65 = vsel %vm51, %v31, 0
    %v68 = vsel %vm51, %v32, 0
    %v71 = vsel %vm51, %v33, 0
    %v74 = vsel %vm51, %v34, 0
    %v77 = vsel %vm51, %v35, 0
    %v80 = vsel %vm51, %v36, 0
    %v83 = vsel %vm51, %v37, 0
    %v86 = vsel %vm51, %v38, 0
    %v89 = vsel %vm51, %v39, 0
    %v92 = vsel %vm51, %v40, 0
    %v95 = vsel %vm51, %v41, 0
    %v98 = vsel %vm51, %v42, 0
    %100 = vmatpush.msra.mxu0 0.0
    %101 = vmatpush.msra.mxu0 0.0
    %102 = vmatpush.msra.mxu0 0.0
    %103 = vmatpush.msra.mxu0 0.0
    %104 = vmatpush.msra.mxu0 0.0
    %105 = vmatpush.msra.mxu0 0.0
    %106 = vmatpush.msra.mxu0 0.0
    %107 = vmatpush.msra.mxu0 0.0
    %108 = vmatpush.msra.mxu0 0.0
    %109 = vmatpush.msra.mxu0 0.0
    %110 = vmatpush.msra.mxu0 0.0
    %111 = vmatpush.msra.mxu0 0.0
    %112 = vmatpush.msra.mxu0 %v46
    %113 = vmatpush.msra.mxu0 %v45
    %114 = vmatpush.msra.mxu0 %v44
    %115 = vmatpush.msra.mxu0 %v43
    %116 = vmatmul.f32.gmra.mxu0 %v53
    %v117 = vpop.f32.mrf.mxu0
    %v118 = vadd.f32 %v49, %v117
    %119 = vmatmul.f32.gmra.mxu0 %v56
    %v120 = vpop.f32.mrf.mxu0
    %v121 = vadd.f32 %v49, %v120
    %122 = vmatmul.f32.gmra.mxu0 %v59
    %v123 = vpop.f32.mrf.mxu0
    %v124 = vadd.f32 %v49, %v123
    %125 = vmatmul.f32.gmra.mxu0 %v62
    %v126 = vpop.f32.mrf.mxu0
    %v127 = vadd.f32 %v49, %v126
    %128 = vmatmul.f32.gmra.mxu0 %v65
    %v129 = vpop.f32.mrf.mxu0
    %v130 = vadd.f32 %v49, %v129
    %131 = vmatmul.f32.gmra.mxu0 %v68
    %v132 = vpop.f32.mrf.mxu0
    %v133 = vadd.f32 %v49, %v132
    %134 = vmatmul.f32.gmra.mxu0 %v71
    %v135 = vpop.f32.mrf.mxu0
    %v136 = vadd.f32 %v49, %v135
    %137 = vmatmul.f32.gmra.mxu0 %v74
    %v138 = vpop.f32.mrf.mxu0
    %v139 = vadd.f32 %v49, %v138
    %140 = vmatmul.f32.gmra.mxu0 %v77
    %v141 = vpop.f32.mrf.mxu0
    %v142 = vadd.f32 %v49, %v141
    %143 = vmatmul.f32.gmra.mxu0 %v80
    %v144 = vpop.f32.mrf.mxu0
    %v145 = vadd.f32 %v49, %v144
    %146 = vmatmul.f32.gmra.mxu0 %v83
    %v147 = vpop.f32.mrf.mxu0
    %v148 = vadd.f32 %v49, %v147
    %149 = vmatmul.f32.gmra.mxu0 %v86
    %v150 = vpop.f32.mrf.mxu0
    %v151 = vadd.f32 %v49, %v150
    %152 = vmatmul.f32.gmra.mxu0 %v89
    %v153 = vpop.f32.mrf.mxu0
    %v154 = vadd.f32 %v49, %v153
    %155 = vmatmul.f32.gmra.mxu0 %v92
    %v156 = vpop.f32.mrf.mxu0
    %v157 = vadd.f32 %v49, %v156
    %158 = vmatmul.f32.gmra.mxu0 %v95
    %v159 = vpop.f32.mrf.mxu0
    %v160 = vadd.f32 %v49, %v159
    %161 = vmatmul.f32.gmra.mxu0 %v98
    %v162 = vpop.f32.mrf.mxu0
    %v163 = vadd.f32 %v49, %v162
    %164 = vdwg.mxu0
    %v165 = vlaneseq
    %v166 = vand.u32 %v165, 127
    %v167 = vld [vmem:[%s0] sm:$0xff]
    %v168 = vld [vmem:[%s0 + $0x8] sm:$0xff]
    %v169 = vld [vmem:[%s0 + $0x10] sm:$0xff]
    %v170 = vld [vmem:[%s0 + $0x18] sm:$0xff]
    %v171 = vld [vmem:[%s0 + $0x20] sm:$0xff]
    %v172 = vld [vmem:[%s0 + $0x28] sm:$0xff]
    %v173 = vld [vmem:[%s0 + $0x30] sm:$0xff]
    %v174 = vld [vmem:[%s0 + $0x38] sm:$0xff]
    %175 = vset.pattern.permute.xlu0 0
    %176 = vperm.xlu0 %175, %v167
    %v177 = vpop.permute.xlu0 %176
    %178 = vset.pattern.permute.xlu0 0
    %179 = vperm.xlu0 %178, %v168
    %v180 = vpop.permute.xlu0 %179
    %181 = vset.pattern.permute.xlu0 0
    %182 = vperm.xlu0 %181, %v169
    %v183 = vpop.permute.xlu0 %182
    %184 = vset.pattern.permute.xlu0 0
    %185 = vperm.xlu0 %184, %v170
    %v186 = vpop.permute.xlu0 %185
    %187 = vset.pattern.permute.xlu0 0
    %188 = vperm.xlu0 %187, %v171
    %v189 = vpop.permute.xlu0 %188
    %190 = vset.pattern.permute.xlu0 0
    %191 = vperm.xlu0 %190, %v172
    %v192 = vpop.permute.xlu0 %191
    %193 = vset.pattern.permute.xlu0 0
    %194 = vperm.xlu0 %193, %v173
    %v195 = vpop.permute.xlu0 %194
    %196 = vset.pattern.permute.xlu0 0
    %197 = vperm.xlu0 %196, %v174
    %v198 = vpop.permute.xlu0 %197
    %vm199 = vcmp.eq.s32.totalorder %v166, %v177
    %vm200 = vcmp.eq.s32.totalorder %v166, %v180
    %vm201 = vcmp.eq.s32.totalorder %v166, %v183
    %vm202 = vcmp.eq.s32.totalorder %v166, %v186
    %vm203 = vcmp.eq.s32.totalorder %v166, %v189
    %vm204 = vcmp.eq.s32.totalorder %v166, %v192
    %vm205 = vcmp.eq.s32.totalorder %v166, %v195
    %vm206 = vcmp.eq.s32.totalorder %v166, %v198
    %v207 = vsel %vm199, 1, 0
    %v208 = vsel %vm200, 1, 0
    %v209 = vsel %vm201, 1, 0
    %v210 = vsel %vm202, 1, 0
    %v211 = vsel %vm203, 1, 0
    %v212 = vsel %vm204, 1, 0
    %v213 = vsel %vm205, 1, 0
    %v214 = vsel %vm206, 1, 0
    %v215 = vcvt.s32.f32 %v207
    %v216 = vcvt.s32.f32 %v208
    %v217 = vcvt.s32.f32 %v209
    %v218 = vcvt.s32.f32 %v210
    %v219 = vcvt.s32.f32 %v211
    %v220 = vcvt.s32.f32 %v212
    %v221 = vcvt.s32.f32 %v213
    %v222 = vcvt.s32.f32 %v214
    %223 = vmatpush.msra.mxu0 %v163
    %224 = vmatpush.msra.mxu0 %v160
    %225 = vmatpush.msra.mxu0 %v157
    %226 = vmatpush.msra.mxu0 %v154
    %227 = vmatpush.msra.mxu0 %v151
    %228 = vmatpush.msra.mxu0 %v148
    %229 = vmatpush.msra.mxu0 %v145
    %230 = vmatpush.msra.mxu0 %v142
    %231 = vmatpush.msra.mxu0 %v139
    %232 = vmatpush.msra.mxu0 %v136
    %233 = vmatpush.msra.mxu0 %v133
    %234 = vmatpush.msra.mxu0 %v130
    %235 = vmatpush.msra.mxu0 %v127
    %236 = vmatpush.msra.mxu0 %v124
    %237 = vmatpush.msra.mxu0 %v121
    %238 = vmatpush.msra.mxu0 %v118
    %239 = vmatmul.f32.gmra.mxu0 %v215
    %v240 = vpop.f32.mrf.mxu0
    %v241 = vadd.f32 0.0, %v240
    %242 = vmatmul.f32.gmra.mxu0 %v216
    %v243 = vpop.f32.mrf.mxu0
    %v244 = vadd.f32 0.0, %v243
    %245 = vmatmul.f32.gmra.mxu0 %v217
    %v246 = vpop.f32.mrf.mxu0
    %v247 = vadd.f32 0.0, %v246
    %248 = vmatmul.f32.gmra.mxu0 %v218
    %v249 = vpop.f32.mrf.mxu0
    %v250 = vadd.f32 0.0, %v249
    %251 = vmatmul.f32.gmra.mxu0 %v219
    %v252 = vpop.f32.mrf.mxu0
    %v253 = vadd.f32 0.0, %v252
    %254 = vmatmul.f32.gmra.mxu0 %v220
    %v255 = vpop.f32.mrf.mxu0
    %v256 = vadd.f32 0.0, %v255
    %257 = vmatmul.f32.gmra.mxu0 %v221
    %v258 = vpop.f32.mrf.mxu0
    %v259 = vadd.f32 0.0, %v258
    %260 = vmatmul.f32.gmra.mxu0 %v222
    %v261 = vpop.f32.mrf.mxu0
    %v262 = vadd.f32 0.0, %v261
    %263 = vdwg.mxu0
    %264 = vst [vmem:[#allocation2] sm:$0xff] %v241
    %265 = vst [vmem:[#allocation2 + $0x8] sm:$0xff] %v244
    %266 = vst [vmem:[#allocation2 + $0x10] sm:$0xff] %v247
    %267 = vst [vmem:[#allocation2 + $0x18] sm:$0xff] %v250
    %268 = vst [vmem:[#allocation2 + $0x20] sm:$0xff] %v253
    %269 = vst [vmem:[#allocation2 + $0x28] sm:$0xff] %v256
    %270 = vst [vmem:[#allocation2 + $0x30] sm:$0xff] %v259
    %271 = vst [vmem:[#allocation2 + $0x38] sm:$0xff] %v262
    %vm272 = vcmp.ge.s32.totalorder %v166, 64
    %vm273 = vcmp.lt.s32.totalorder %v166, 96
    %vm274 = vmand %vm272, %vm273
    %v275 = vsel %vm274, 2.0, 1.0
    %v276 = vld [vmem:[%s3] sm:$0xff]
    %v277 = vld [vmem:[%s3 + $0x8] sm:$0xff]
    %v278 = vld [vmem:[%s3 + $0x10] sm:$0xff]
    %v279 = vld [vmem:[%s3 + $0x18] sm:$0xff]
    %v280 = vld [vmem:[#allocation2] sm:$0xff]
    %v282 = vsel %vm51, 0.0, 0
    %284 = vmatpush.msra.mxu0 0.0
    %285 = vmatpush.msra.mxu0 0.0
    %286 = vmatpush.msra.mxu0 0.0
    %287 = vmatpush.msra.mxu0 0.0
    %288 = vmatpush.msra.mxu0 0.0
    %289 = vmatpush.msra.mxu0 0.0
    %290 = vmatpush.msra.mxu0 0.0
    %291 = vmatpush.msra.mxu0 0.0
    %292 = vmatpush.msra.mxu0 0.0
    %293 = vmatpush.msra.mxu0 0.0
    %294 = vmatpush.msra.mxu0 0.0
    %295 = vmatpush.msra.mxu0 0.0
    %296 = vmatpush.msra.mxu0 %v279
    %297 = vmatpush.msra.mxu0 %v278
    %298 = vmatpush.msra.mxu0 %v277
    %299 = vmatpush.msra.mxu0 %v276
    %300 = vmatmul.f32.gmra.mxu0 %v282
    %v301 = vpop.f32.mrf.mxu0
    %v302 = vadd.f32 0.0, %v301
    %303 = vdwg.mxu0
    %v304 = vadd.f32 %v280, %v302
    %v305 = vmul.f32 %v304, %v275
    %v306 = vxor.u32 %v305, 2147483648
    %v307 = vmul.f32 %v306, 1.442695
    %v308 = vpow.pop %v307
    %v309 = vadd.f32 %v308, 1.0
    %v310 = vrcp.pop %v309
    %v311 = vmul.f32 %v309, %v310
    %v312 = vsub.f32 1.0, %v311
    %v313 = vmul.f32 %v310, %v312
    %v314 = vadd.f32 %v310, %v313
    %vm315 = vweird.f32 %v309
    %vm316 = vweird.f32 %v310
    %vm317 = vmor %vm315, %vm316
    %v318 = vsel %vm317, %v310, %v314
    %v319 = vand.u32 2147483647, %v309
    %vm320 = vcmp.eq.f32.partialorder %v319, 8.507059e+37
    %v321 = vand.u32 %v309, 2147483648
    %v322 = vor.u32 1.1754944e-38, %v321
    %v323 = vsel %vm320, %v322, %v318
    %v324 = vmul.f32 1.0, %v323
    %v325 = vmul.f32 %v324, 2.0
    %v326 = vsub.f32 %v325, 1.0
    %v327 = vsel %vm274, %v326, %v324
    %v328 = vmul.f32 %v327, 0.0
    %330 = vrot.lane.b32.xlu0 %v327, 64
    %v331 = vpop.permute.xlu0 %330
    %v333 = vmul.f32 %v327, %v331
    %335 = vrot.lane.b32.xlu0 %v333, 32
    %v336 = vpop.permute.xlu0 %335
    %v338 = vadd.f32 %v328, %v336
    %v339 = vtanh.pop %v338
    %341 = vrot.lane.b32.xlu0 %v339, 64
    %v342 = vpop.permute.xlu0 %341
    %v344 = vmul.f32 %v327, %v342
    %s345 = scalar_lea.vmem [#allocation2], 8
    %v346 = vld [vmem:[%s345] sm:$0xff]
    %348 = vrot.lane.b32.xlu0 %v344, 32
    %v349 = vpop.permute.xlu0 %348
    %v350 = vsel %vm51, %v349, 0
    %352 = vmatpush.msra.mxu0 0.0
    %353 = vmatpush.msra.mxu0 0.0
    %354 = vmatpush.msra.mxu0 0.0
    %355 = vmatpush.msra.mxu0 0.0
    %356 = vmatpush.msra.mxu0 0.0
    %357 = vmatpush.msra.mxu0 0.0
    %358 = vmatpush.msra.mxu0 0.0
    %359 = vmatpush.msra.mxu0 0.0
    %360 = vmatpush.msra.mxu0 0.0
    %361 = vmatpush.msra.mxu0 0.0
    %362 = vmatpush.msra.mxu0 0.0
    %363 = vmatpush.msra.mxu0 0.0
    %364 = vmatpush.msra.mxu0 %v279
    %365 = vmatpush.msra.mxu0 %v278
    %366 = vmatpush.msra.mxu0 %v277
    %367 = vmatpush.msra.mxu0 %v276
    %368 = vmatmul.f32.gmra.mxu0 %v350
    %v369 = vpop.f32.mrf.mxu0
    %v370 = vadd.f32 0.0, %v369
    %371 = vdwg.mxu0
    %v372 = vadd.f32 %v346, %v370
    %v373 = vmul.f32 %v372, %v275
    %v374 = vxor.u32 %v373, 2147483648
    %v375 = vmul.f32 %v374, 1.442695
    %v376 = vpow.pop %v375
    %v377 = vadd.f32 %v376, 1.0
    %v378 = vrcp.pop %v377
    %v379 = vmul.f32 %v377, %v378
    %v380 = vsub.f32 1.0, %v379
    %v381 = vmul.f32 %v378, %v380
    %v382 = vadd.f32 %v378, %v381
    %vm383 = vweird.f32 %v377
    %vm384 = vweird.f32 %v378
    %vm385 = vmor %vm383, %vm384
    %v386 = vsel %vm385, %v378, %v382
    %v387 = vand.u32 2147483647, %v377
    %vm388 = vcmp.eq.f32.partialorder %v387, 8.507059e+37
    %v389 = vand.u32 %v377, 2147483648
    %v390 = vor.u32 1.1754944e-38, %v389
    %v391 = vsel %vm388, %v390, %v386
    %v392 = vmul.f32 1.0, %v391
    %v393 = vmul.f32 %v392, 2.0
    %v394 = vsub.f32 %v393, 1.0
    %v395 = vsel %vm274, %v394, %v392
    %v396 = vmul.f32 %v395, %v338
    %398 = vrot.lane.b32.xlu0 %v395, 64
    %v399 = vpop.permute.xlu0 %398
    %v401 = vmul.f32 %v395, %v399
    %403 = vrot.lane.b32.xlu0 %v401, 32
    %v404 = vpop.permute.xlu0 %403
    %v406 = vadd.f32 %v396, %v404
    %v407 = vtanh.pop %v406
    %409 = vrot.lane.b32.xlu0 %v407, 64
    %v410 = vpop.permute.xlu0 %409
    %v412 = vmul.f32 %v395, %v410
    %s413 = scalar_lea.vmem [#allocation2], 16
    %v414 = vld [vmem:[%s413] sm:$0xff]
    %416 = vrot.lane.b32.xlu0 %v412, 32
    %v417 = vpop.permute.xlu0 %416
    %v418 = vsel %vm51, %v417, 0
    %420 = vmatpush.msra.mxu0 0.0
    %421 = vmatpush.msra.mxu0 0.0
    %422 = vmatpush.msra.mxu0 0.0
    %423 = vmatpush.msra.mxu0 0.0
    %424 = vmatpush.msra.mxu0 0.0
    %425 = vmatpush.msra.mxu0 0.0
    %426 = vmatpush.msra.mxu0 0.0
    %427 = vmatpush.msra.mxu0 0.0
    %428 = vmatpush.msra.mxu0 0.0
    %429 = vmatpush.msra.mxu0 0.0
    %430 = vmatpush.msra.mxu0 0.0
    %431 = vmatpush.msra.mxu0 0.0
    %432 = vmatpush.msra.mxu0 %v279
    %433 = vmatpush.msra.mxu0 %v278
    %434 = vmatpush.msra.mxu0 %v277
    %435 = vmatpush.msra.mxu0 %v276
    %436 = vmatmul.f32.gmra.mxu0 %v418
    %v437 = vpop.f32.mrf.mxu0
    %v438 = vadd.f32 0.0, %v437
    %439 = vdwg.mxu0
    %v440 = vadd.f32 %v414, %v438
    %v441 = vmul.f32 %v440, %v275
    %v442 = vxor.u32 %v441, 2147483648
    %v443 = vmul.f32 %v442, 1.442695
    %v444 = vpow.pop %v443
    %v445 = vadd.f32 %v444, 1.0
    %v446 = vrcp.pop %v445
    %v447 = vmul.f32 %v445, %v446
    %v448 = vsub.f32 1.0, %v447
    %v449 = vmul.f32 %v446, %v448
    %v450 = vadd.f32 %v446, %v449
    %vm451 = vweird.f32 %v445
    %vm452 = vweird.f32 %v446
    %vm453 = vmor %vm451, %vm452
    %v454 = vsel %vm453, %v446, %v450
    %v455 = vand.u32 2147483647, %v445
    %vm456 = vcmp.eq.f32.partialorder %v455, 8.507059e+37
    %v457 = vand.u32 %v445, 2147483648
    %v458 = vor.u32 1.1754944e-38, %v457
    %v459 = vsel %vm456, %v458, %v454
    %v460 = vmul.f32 1.0, %v459
    %v461 = vmul.f32 %v460, 2.0
    %v462 = vsub.f32 %v461, 1.0
    %v463 = vsel %vm274, %v462, %v460
    %v464 = vmul.f32 %v463, %v406
    %466 = vrot.lane.b32.xlu0 %v463, 64
    %v467 = vpop.permute.xlu0 %466
    %v469 = vmul.f32 %v463, %v467
    %471 = vrot.lane.b32.xlu0 %v469, 32
    %v472 = vpop.permute.xlu0 %471
    %v474 = vadd.f32 %v464, %v472
    %v475 = vtanh.pop %v474
    %477 = vrot.lane.b32.xlu0 %v475, 64
    %v478 = vpop.permute.xlu0 %477
    %v480 = vmul.f32 %v463, %v478
    %s481 = scalar_lea.vmem [#allocation2], 24
    %v482 = vld [vmem:[%s481] sm:$0xff]
    %484 = vrot.lane.b32.xlu0 %v480, 32
    %v485 = vpop.permute.xlu0 %484
    %v486 = vsel %vm51, %v485, 0
    %488 = vmatpush.msra.mxu0 0.0
    %489 = vmatpush.msra.mxu0 0.0
    %490 = vmatpush.msra.mxu0 0.0
    %491 = vmatpush.msra.mxu0 0.0
    %492 = vmatpush.msra.mxu0 0.0
    %493 = vmatpush.msra.mxu0 0.0
    %494 = vmatpush.msra.mxu0 0.0
    %495 = vmatpush.msra.mxu0 0.0
    %496 = vmatpush.msra.mxu0 0.0
    %497 = vmatpush.msra.mxu0 0.0
    %498 = vmatpush.msra.mxu0 0.0
    %499 = vmatpush.msra.mxu0 0.0
    %500 = vmatpush.msra.mxu0 %v279
    %501 = vmatpush.msra.mxu0 %v278
    %502 = vmatpush.msra.mxu0 %v277
    %503 = vmatpush.msra.mxu0 %v276
    %504 = vmatmul.f32.gmra.mxu0 %v486
    %v505 = vpop.f32.mrf.mxu0
    %v506 = vadd.f32 0.0, %v505
    %507 = vdwg.mxu0
    %v508 = vadd.f32 %v482, %v506
    %v509 = vmul.f32 %v508, %v275
    %v510 = vxor.u32 %v509, 2147483648
    %v511 = vmul.f32 %v510, 1.442695
    %v512 = vpow.pop %v511
    %v513 = vadd.f32 %v512, 1.0
    %v514 = vrcp.pop %v513
    %v515 = vmul.f32 %v513, %v514
    %v516 = vsub.f32 1.0, %v515
    %v517 = vmul.f32 %v514, %v516
    %v518 = vadd.f32 %v514, %v517
    %vm519 = vweird.f32 %v513
    %vm520 = vweird.f32 %v514
    %vm521 = vmor %vm519, %vm520
    %v522 = vsel %vm521, %v514, %v518
    %v523 = vand.u32 2147483647, %v513
    %vm524 = vcmp.eq.f32.partialorder %v523, 8.507059e+37
    %v525 = vand.u32 %v513, 2147483648
    %v526 = vor.u32 1.1754944e-38, %v525
    %v527 = vsel %vm524, %v526, %v522
    %v528 = vmul.f32 1.0, %v527
    %v529 = vmul.f32 %v528, 2.0
    %v530 = vsub.f32 %v529, 1.0
    %v531 = vsel %vm274, %v530, %v528
    %v532 = vmul.f32 %v531, %v474
    %534 = vrot.lane.b32.xlu0 %v531, 64
    %v535 = vpop.permute.xlu0 %534
    %v537 = vmul.f32 %v531, %v535
    %539 = vrot.lane.b32.xlu0 %v537, 32
    %v540 = vpop.permute.xlu0 %539
    %v542 = vadd.f32 %v532, %v540
    %v543 = vtanh.pop %v542
    %545 = vrot.lane.b32.xlu0 %v543, 64
    %v546 = vpop.permute.xlu0 %545
    %v548 = vmul.f32 %v531, %v546
    %s549 = scalar_lea.vmem [#allocation2], 32
    %v550 = vld [vmem:[%s549] sm:$0xff]
    %552 = vrot.lane.b32.xlu0 %v548, 32
    %v553 = vpop.permute.xlu0 %552
    %v554 = vsel %vm51, %v553, 0
    %556 = vmatpush.msra.mxu0 0.0
    %557 = vmatpush.msra.mxu0 0.0
    %558 = vmatpush.msra.mxu0 0.0
    %559 = vmatpush.msra.mxu0 0.0
    %560 = vmatpush.msra.mxu0 0.0
    %561 = vmatpush.msra.mxu0 0.0
    %562 = vmatpush.msra.mxu0 0.0
    %563 = vmatpush.msra.mxu0 0.0
    %564 = vmatpush.msra.mxu0 0.0
    %565 = vmatpush.msra.mxu0 0.0
    %566 = vmatpush.msra.mxu0 0.0
    %567 = vmatpush.msra.mxu0 0.0
    %568 = vmatpush.msra.mxu0 %v279
    %569 = vmatpush.msra.mxu0 %v278
    %570 = vmatpush.msra.mxu0 %v277
    %571 = vmatpush.msra.mxu0 %v276
    %572 = vmatmul.f32.gmra.mxu0 %v554
    %v573 = vpop.f32.mrf.mxu0
    %v574 = vadd.f32 0.0, %v573
    %575 = vdwg.mxu0
    %v576 = vadd.f32 %v550, %v574
    %v577 = vmul.f32 %v576, %v275
    %v578 = vxor.u32 %v577, 2147483648
    %v579 = vmul.f32 %v578, 1.442695
    %v580 = vpow.pop %v579
    %v581 = vadd.f32 %v580, 1.0
    %v582 = vrcp.pop %v581
    %v583 = vmul.f32 %v581, %v582
    %v584 = vsub.f32 1.0, %v583
    %v585 = vmul.f32 %v582, %v584
    %v586 = vadd.f32 %v582, %v585
    %vm587 = vweird.f32 %v581
    %vm588 = vweird.f32 %v582
    %vm589 = vmor %vm587, %vm588
    %v590 = vsel %vm589, %v582, %v586
    %v591 = vand.u32 2147483647, %v581
    %vm592 = vcmp.eq.f32.partialorder %v591, 8.507059e+37
    %v593 = vand.u32 %v581, 2147483648
    %v594 = vor.u32 1.1754944e-38, %v593
    %v595 = vsel %vm592, %v594, %v590
    %v596 = vmul.f32 1.0, %v595
    %v597 = vmul.f32 %v596, 2.0
    %v598 = vsub.f32 %v597, 1.0
    %v599 = vsel %vm274, %v598, %v596
    %v600 = vmul.f32 %v599, %v542
    %602 = vrot.lane.b32.xlu0 %v599, 64
    %v603 = vpop.permute.xlu0 %602
    %v605 = vmul.f32 %v599, %v603
    %607 = vrot.lane.b32.xlu0 %v605, 32
    %v608 = vpop.permute.xlu0 %607
    %v610 = vadd.f32 %v600, %v608
    %v611 = vtanh.pop %v610
    %613 = vrot.lane.b32.xlu0 %v611, 64
    %v614 = vpop.permute.xlu0 %613
    %v616 = vmul.f32 %v599, %v614
    %s617 = scalar_lea.vmem [#allocation2], 40
    %v618 = vld [vmem:[%s617] sm:$0xff]
    %620 = vrot.lane.b32.xlu0 %v616, 32
    %v621 = vpop.permute.xlu0 %620
    %v622 = vsel %vm51, %v621, 0
    %624 = vmatpush.msra.mxu0 0.0
    %625 = vmatpush.msra.mxu0 0.0
    %626 = vmatpush.msra.mxu0 0.0
    %627 = vmatpush.msra.mxu0 0.0
    %628 = vmatpush.msra.mxu0 0.0
    %629 = vmatpush.msra.mxu0 0.0
    %630 = vmatpush.msra.mxu0 0.0
    %631 = vmatpush.msra.mxu0 0.0
    %632 = vmatpush.msra.mxu0 0.0
    %633 = vmatpush.msra.mxu0 0.0
    %634 = vmatpush.msra.mxu0 0.0
    %635 = vmatpush.msra.mxu0 0.0
    %636 = vmatpush.msra.mxu0 %v279
    %637 = vmatpush.msra.mxu0 %v278
    %638 = vmatpush.msra.mxu0 %v277
    %639 = vmatpush.msra.mxu0 %v276
    %640 = vmatmul.f32.gmra.mxu0 %v622
    %v641 = vpop.f32.mrf.mxu0
    %v642 = vadd.f32 0.0, %v641
    %643 = vdwg.mxu0
    %v644 = vadd.f32 %v618, %v642
    %v645 = vmul.f32 %v644, %v275
    %v646 = vxor.u32 %v645, 2147483648
    %v647 = vmul.f32 %v646, 1.442695
    %v648 = vpow.pop %v647
    %v649 = vadd.f32 %v648, 1.0
    %v650 = vrcp.pop %v649
    %v651 = vmul.f32 %v649, %v650
    %v652 = vsub.f32 1.0, %v651
    %v653 = vmul.f32 %v650, %v652
    %v654 = vadd.f32 %v650, %v653
    %vm655 = vweird.f32 %v649
    %vm656 = vweird.f32 %v650
    %vm657 = vmor %vm655, %vm656
    %v658 = vsel %vm657, %v650, %v654
    %v659 = vand.u32 2147483647, %v649
    %vm660 = vcmp.eq.f32.partialorder %v659, 8.507059e+37
    %v661 = vand.u32 %v649, 2147483648
    %v662 = vor.u32 1.1754944e-38, %v661
    %v663 = vsel %vm660, %v662, %v658
    %v664 = vmul.f32 1.0, %v663
    %v665 = vmul.f32 %v664, 2.0
    %v666 = vsub.f32 %v665, 1.0
    %v667 = vsel %vm274, %v666, %v664
    %v668 = vmul.f32 %v667, %v610
    %670 = vrot.lane.b32.xlu0 %v667, 64
    %v671 = vpop.permute.xlu0 %670
    %v673 = vmul.f32 %v667, %v671
    %675 = vrot.lane.b32.xlu0 %v673, 32
    %v676 = vpop.permute.xlu0 %675
    %v678 = vadd.f32 %v668, %v676
    %v679 = vtanh.pop %v678
    %681 = vrot.lane.b32.xlu0 %v679, 64
    %v682 = vpop.permute.xlu0 %681
    %v684 = vmul.f32 %v667, %v682
    %s685 = scalar_lea.vmem [#allocation2], 48
    %v686 = vld [vmem:[%s685] sm:$0xff]
    %688 = vrot.lane.b32.xlu0 %v684, 32
    %v689 = vpop.permute.xlu0 %688
    %v690 = vsel %vm51, %v689, 0
    %692 = vmatpush.msra.mxu0 0.0
    %693 = vmatpush.msra.mxu0 0.0
    %694 = vmatpush.msra.mxu0 0.0
    %695 = vmatpush.msra.mxu0 0.0
    %696 = vmatpush.msra.mxu0 0.0
    %697 = vmatpush.msra.mxu0 0.0
    %698 = vmatpush.msra.mxu0 0.0
    %699 = vmatpush.msra.mxu0 0.0
    %700 = vmatpush.msra.mxu0 0.0
    %701 = vmatpush.msra.mxu0 0.0
    %702 = vmatpush.msra.mxu0 0.0
    %703 = vmatpush.msra.mxu0 0.0
    %704 = vmatpush.msra.mxu0 %v279
    %705 = vmatpush.msra.mxu0 %v278
    %706 = vmatpush.msra.mxu0 %v277
    %707 = vmatpush.msra.mxu0 %v276
    %708 = vmatmul.f32.gmra.mxu0 %v690
    %v709 = vpop.f32.mrf.mxu0
    %v710 = vadd.f32 0.0, %v709
    %711 = vdwg.mxu0
    %v712 = vadd.f32 %v686, %v710
    %v713 = vmul.f32 %v712, %v275
    %v714 = vxor.u32 %v713, 2147483648
    %v715 = vmul.f32 %v714, 1.442695
    %v716 = vpow.pop %v715
    %v717 = vadd.f32 %v716, 1.0
    %v718 = vrcp.pop %v717
    %v719 = vmul.f32 %v717, %v718
    %v720 = vsub.f32 1.0, %v719
    %v721 = vmul.f32 %v718, %v720
    %v722 = vadd.f32 %v718, %v721
    %vm723 = vweird.f32 %v717
    %vm724 = vweird.f32 %v718
    %vm725 = vmor %vm723, %vm724
    %v726 = vsel %vm725, %v718, %v722
    %v727 = vand.u32 2147483647, %v717
    %vm728 = vcmp.eq.f32.partialorder %v727, 8.507059e+37
    %v729 = vand.u32 %v717, 2147483648
    %v730 = vor.u32 1.1754944e-38, %v729
    %v731 = vsel %vm728, %v730, %v726
    %v732 = vmul.f32 1.0, %v731
    %v733 = vmul.f32 %v732, 2.0
    %v734 = vsub.f32 %v733, 1.0
    %v735 = vsel %vm274, %v734, %v732
    %v736 = vmul.f32 %v735, %v678
    %738 = vrot.lane.b32.xlu0 %v735, 64
    %v739 = vpop.permute.xlu0 %738
    %v741 = vmul.f32 %v735, %v739
    %743 = vrot.lane.b32.xlu0 %v741, 32
    %v744 = vpop.permute.xlu0 %743
    %v746 = vadd.f32 %v736, %v744
    %v747 = vtanh.pop %v746
    %749 = vrot.lane.b32.xlu0 %v747, 64
    %v750 = vpop.permute.xlu0 %749
    %v752 = vmul.f32 %v735, %v750
    %s753 = scalar_lea.vmem [#allocation2], 56
    %v754 = vld [vmem:[%s753] sm:$0xff]
    %756 = vrot.lane.b32.xlu0 %v752, 32
    %v757 = vpop.permute.xlu0 %756
    %v758 = vsel %vm51, %v757, 0
    %760 = vmatpush.msra.mxu0 0.0
    %761 = vmatpush.msra.mxu0 0.0
    %762 = vmatpush.msra.mxu0 0.0
    %763 = vmatpush.msra.mxu0 0.0
    %764 = vmatpush.msra.mxu0 0.0
    %765 = vmatpush.msra.mxu0 0.0
    %766 = vmatpush.msra.mxu0 0.0
    %767 = vmatpush.msra.mxu0 0.0
    %768 = vmatpush.msra.mxu0 0.0
    %769 = vmatpush.msra.mxu0 0.0
    %770 = vmatpush.msra.mxu0 0.0
    %771 = vmatpush.msra.mxu0 0.0
    %772 = vmatpush.msra.mxu0 %v279
    %773 = vmatpush.msra.mxu0 %v278
    %774 = vmatpush.msra.mxu0 %v277
    %775 = vmatpush.msra.mxu0 %v276
    %776 = vmatmul.f32.gmra.mxu0 %v758
    %v777 = vpop.f32.mrf.mxu0
    %v778 = vadd.f32 0.0, %v777
    %779 = vdwg.mxu0
    %v780 = vadd.f32 %v754, %v778
    %v781 = vmul.f32 %v780, %v275
    %v782 = vxor.u32 %v781, 2147483648
    %v783 = vmul.f32 %v782, 1.442695
    %v784 = vpow.pop %v783
    %v785 = vadd.f32 %v784, 1.0
    %v786 = vrcp.pop %v785
    %v787 = vmul.f32 %v785, %v786
    %v788 = vsub.f32 1.0, %v787
    %v789 = vmul.f32 %v786, %v788
    %v790 = vadd.f32 %v786, %v789
    %vm791 = vweird.f32 %v785
    %vm792 = vweird.f32 %v786
    %vm793 = vmor %vm791, %vm792
    %v794 = vsel %vm793, %v786, %v790
    %v795 = vand.u32 2147483647, %v785
    %vm796 = vcmp.eq.f32.partialorder %v795, 8.507059e+37
    %v797 = vand.u32 %v785, 2147483648
    %v798 = vor.u32 1.1754944e-38, %v797
    %v799 = vsel %vm796, %v798, %v794
    %v800 = vmul.f32 1.0, %v799
    %v801 = vmul.f32 %v800, 2.0
    %v802 = vsub.f32 %v801, 1.0
    %v803 = vsel %vm274, %v802, %v800
    %v804 = vmul.f32 %v803, %v746
    %806 = vrot.lane.b32.xlu0 %v803, 64
    %v807 = vpop.permute.xlu0 %806
    %v809 = vmul.f32 %v803, %v807
    %811 = vrot.lane.b32.xlu0 %v809, 32
    %v812 = vpop.permute.xlu0 %811
    %v814 = vadd.f32 %v804, %v812
    %v815 = vtanh.pop %v814
    %817 = vrot.lane.b32.xlu0 %v815, 64
    %v818 = vpop.permute.xlu0 %817
    %v820 = vmul.f32 %v803, %v818
    %v821 = vld [vmem:[%s5] sm:$0xff]
    %v822 = vld [vmem:[%s5 + $0x8] sm:$0xff]
    %v823 = vld [vmem:[%s5 + $0x10] sm:$0xff]
    %v824 = vld [vmem:[%s5 + $0x18] sm:$0xff]
    %v825 = vld [vmem:[%s6] sm:$0x1]
    %v827 = vperm.slane %v825, 0
    %830 = vrot.lane.b32.xlu0 %v820, 32
    %v831 = vpop.permute.xlu0 %830
    %v832 = vsel %vm51, %v831, 0
    %834 = vmatpush.msra.mxu0 0.0
    %835 = vmatpush.msra.mxu0 0.0
    %836 = vmatpush.msra.mxu0 0.0
    %837 = vmatpush.msra.mxu0 0.0
    %838 = vmatpush.msra.mxu0 0.0
    %839 = vmatpush.msra.mxu0 0.0
    %840 = vmatpush.msra.mxu0 0.0
    %841 = vmatpush.msra.mxu0 0.0
    %842 = vmatpush.msra.mxu0 0.0
    %843 = vmatpush.msra.mxu0 0.0
    %844 = vmatpush.msra.mxu0 0.0
    %845 = vmatpush.msra.mxu0 0.0
    %846 = vmatpush.msra.mxu0 %v824
    %847 = vmatpush.msra.mxu0 %v823
    %848 = vmatpush.msra.mxu0 %v822
    %849 = vmatpush.msra.mxu0 %v821
    %850 = vmatmul.f32.gmra.mxu0 %v832
    %v851 = vpop.f32.mrf.mxu0
    %v852 = vadd.f32 %v827, %v851
    %853 = vdwg.mxu0
    %854 = vmax.xlane.f32.xlu0 %v852
    %v855 = vpop.xlane.xlu0 %854
    %v856 = vsub.f32 %v852, %v855
    %v857 = vmul.f32 %v856, 1.442695
    %v858 = vpow.pop %v857
    %859 = vadd.xlane.f32.xlu0 %v858
    %v860 = vpop.xlane.xlu0 %859
    %v861 = vlog2.pop %v860
    %v862 = vmul.f32 %v861, 0.6931472
    %v863 = vsub.f32 %v856, %v862
    %864 = vst [vmem:[#allocation3] sm:$0xff] %v863
    // Predicated region
    $region30: #{tpu_custom_call.1} parent=1 // pred_check
      _
    $region31: #{tpu_custom_call.1} parent=1 // pred_check_branch
      %866 = sbr.rel (0) target = $region33
    $region32: #{tpu_custom_call.1} parent=1 // pred_region
      %868 = vsyncadd [#allocation4], 0
      %s870 = sshll.u32 [#allocation3], 4
      %s871 = int_to_ptr.vmem [resolvable:$true] %s870
      %s872 = sshll.u32 %s7, 4
      %s873 = int_to_ptr.hbm [resolvable:$true] %s872
      %875 = dma.vmem_to_hbm [thread:$0]  %s871, 128, %s873, [#allocation4]
    $region33: #{tpu_custom_call.1} parent=1 // pred_fallthru
      _
    // Predicated region
    $region34: #{tpu_custom_call.1} parent=1 // pred_check
      _
    $region35: #{tpu_custom_call.1} parent=1 // pred_check_branch
      %877 = sbr.rel (0) target = $region37
    $region36: #{tpu_custom_call.1} parent=1 // pred_region
      %879 = dma.done [#allocation4], 128
    $region37: #{tpu_custom_call.1} parent=1 // pred_fallthru
      _
    %880 = vsyncpa [#allocation4], 1

</llo_original>
